<compile_context>
chip_gen: v7x
topology: tpu7x:2x2x1
jax: 0.10.0
libtpu: 0.0.40
codegen_flags: <defaults>
</compile_context>

<pallas_src>
import functools

import jax
import jax.numpy as jnp
from jax.experimental import pallas as pl
from jax.experimental.pallas import tpu as pltpu


def se_kernel(p1_ref, p2_ref, xcol_ref, x37_hbm_ref, out_hbm_ref, x_vmem, dma_sems):
    # p1_ref:   (Cmid, C+1)  VMEM  = [ w1 (Cmid,C) | b1 (Cmid,1) ]   (pre-packed once)
    # p2_ref:   (C, Cmid+1)  VMEM  = [ w2 (C,Cmid) | b2 (C,1) ]      (pre-packed once)
    # xcol_ref: (C, 1)       VMEM  squeezed x38
    # x37_hbm:  (C, H*W)     HBM (pl.ANY) -- copied manually so the DMA overlaps the MLP
    # out_hbm:  (C, H*W)     HBM (pl.ANY), aliased to x37_hbm
    # x_vmem:   (C, H*W)     VMEM scratch (x37 landing / result buffer)
    # dma_sems: (2,)         DMA semaphores (in-copy, out-copy)
    Cmid = p1_ref.shape[0]
    C = p2_ref.shape[0]

    # Kick off the big (~75 KB) x37 HBM->VMEM copy first; the tiny MLP below
    # (two dependent 1-column MXU pushes + clip) runs underneath it.
    cp_in = pltpu.make_async_copy(x37_hbm_ref, x_vmem, dma_sems.at[0])
    cp_in.start()

    w1 = p1_ref[:, :C]                    # (24, 96)
    b1 = p1_ref[:, C:C + 1]               # (24, 1)
    w2 = p2_ref[:, :Cmid]                 # (96, 24)
    b2 = p2_ref[:, Cmid:Cmid + 1]         # (96, 1)
    xcol = xcol_ref[...]                  # (96, 1)

    # conv2d13 (1x1) as column matmul + bias, then ReLU -> (24, 1)
    h = jnp.dot(w1, xcol, preferred_element_type=jnp.float32) + b1
    h = jnp.maximum(h, 0.0)

    # conv2d14 (1x1) as column matmul + bias -> (96, 1)
    s = jnp.dot(w2, h, preferred_element_type=jnp.float32) + b2

    # Hardsigmoid: clamp(x/6 + 0.5, 0, 1); already a (96,1) sublane column.
    s = jnp.clip(s * (1.0 / 6.0) + 0.5, 0.0, 1.0)

    # Wait for x37, scale in place, write back to the (aliased) HBM output.
    cp_in.wait()
    x_vmem[...] = x_vmem[...] * s

    cp_out = pltpu.make_async_copy(x_vmem, out_hbm_ref, dma_sems.at[1])
    cp_out.start()
    cp_out.wait()


def pack_se_params(w1, b1, w2, b2):
    """One-time (parameter-load-time) packing of the tiny weights/biases.

    Keeps the per-call small-operand DMA count at 2 without paying an XLA
    concatenate on every forward.
    """
    Cmid, C = w1.shape[0], w1.shape[1]
    p1 = jnp.concatenate([w1.reshape(Cmid, C), b1.reshape(Cmid, 1)], axis=1)  # (24, 97)
    p2 = jnp.concatenate([w2.reshape(C, Cmid), b2.reshape(C, 1)], axis=1)     # (96, 25)
    return p1, p2


@functools.partial(jax.jit, donate_argnums=(1,))  # x37 is donated: SE mul is its last use
def se_block(x38, x37, p1, p2):
    # x38: (1, C, 1, 1) float32, x37: (1, C, H, W) float32
    N, C, H, W = x37.shape
    HW = H * W

    xcol = x38.reshape(C, 1)           # (96, 1)   contiguous -> free
    x37_flat = x37.reshape(C, HW)      # (96, 196) contiguous -> free

    vmem = pl.BlockSpec(memory_space=pltpu.MemorySpace.VMEM)
    anym = pl.BlockSpec(memory_space=pl.ANY)

    out_flat = pl.pallas_call(
        se_kernel,
        out_shape=jax.ShapeDtypeStruct((C, HW), jnp.float32),
        in_specs=[vmem, vmem, vmem, anym],
        out_specs=anym,
        scratch_shapes=[
            pltpu.VMEM((C, HW), jnp.float32),
            pltpu.SemaphoreType.DMA((2,)),
        ],
        # Output (C, HW) aliases x37_flat (same shape/dtype): with the donated x37
        # no second ~75 KB HBM buffer is allocated or written.
        input_output_aliases={3: 0},
    )(p1, p2, xcol, x37_flat)

    return out_flat.reshape(N, C, H, W)


def se_block_ref(x38, x37, w1, b1, w2, b2):
    # pure-JAX reference matching the PyTorch module forward
    C = x37.shape[1]
    Cmid = w1.shape[0]
    xvec = x38.reshape(1, C)
    h = jnp.maximum(xvec @ w1.reshape(Cmid, C).T + b1.reshape(1, Cmid), 0.0)
    s = h @ w2.reshape(C, Cmid).T + b2.reshape(1, C)
    s = jnp.clip(s / 6.0 + 0.5, 0.0, 1.0)
    return x37 * s.reshape(1, C, 1, 1)


if __name__ == "__main__":
    key = jax.random.PRNGKey(0)
    k_x37, k_x38, k_w1, k_b1, k_w2, k_b2 = jax.random.split(key, 6)

    C, Cmid, H, W = 96, 24, 14, 14

    x37 = jax.random.normal(k_x37, (1, C, H, W), dtype=jnp.float32)
    x38 = jax.random.normal(k_x38, (1, C, 1, 1), dtype=jnp.float32)

    # deterministic parameter init (Conv2d shapes: (Cout, Cin, 1, 1) and (Cout,))
    w1 = jax.random.normal(k_w1, (Cmid, C, 1, 1), dtype=jnp.float32) * 0.1
    b1 = jax.random.normal(k_b1, (Cmid,), dtype=jnp.float32) * 0.1
    w2 = jax.random.normal(k_w2, (C, Cmid, 1, 1), dtype=jnp.float32) * 0.1
    b2 = jax.random.normal(k_b2, (C,), dtype=jnp.float32) * 0.1

    # Reference is computed BEFORE the kernel call because x37 is donated to it.
    ref = jax.block_until_ready(se_block_ref(x38, x37, w1, b1, w2, b2))

    # One-time packing at "parameter load" time (not per forward).
    p1, p2 = pack_se_params(w1, b1, w2, b2)

    out = se_block(x38, x37, p1, p2)
    out = jax.block_until_ready(out)

    assert out.shape == (1, C, H, W)
    assert jnp.allclose(out, ref, atol=1e-5, rtol=1e-5)

    print("KERNEL_OK")
</pallas_src>

<mosaic_0001>
module attributes {stable_mosaic.version = 11 : i64} {
  func.func @se_kernel(%arg0: memref<24x97xf32, #tpu.memory_space<vmem>>, %arg1: memref<96x25xf32, #tpu.memory_space<vmem>>, %arg2: memref<96x1xf32, #tpu.memory_space<vmem>>, %arg3: memref<96x196xf32, #tpu.memory_space<any>>, %arg4: memref<96x196xf32, #tpu.memory_space<any>>, %arg5: memref<96x196xf32, #tpu.memory_space<vmem>>, %arg6: memref<2x!tpu.dma_semaphore, #tpu.memory_space<semaphore_mem>>) attributes {dimension_semantics = [], scalar_prefetch = 0 : i64, scratch_operands = 2 : i64, tpu.core_type = #tpu.core_type<tc>} {
    %c0_i32 = arith.constant 0 : i32
    %0 = tpu.memref_slice %arg6[%c0_i32] : memref<2x!tpu.dma_semaphore, #tpu.memory_space<semaphore_mem>> -> memref<1x!tpu.dma_semaphore, #tpu.memory_space<semaphore_mem>>
    %1 = tpu.memref_squeeze %0 : memref<1x!tpu.dma_semaphore, #tpu.memory_space<semaphore_mem>> -> memref<!tpu.dma_semaphore, #tpu.memory_space<semaphore_mem>>
    tpu.enqueue_dma source(%arg3 : memref<96x196xf32, #tpu.memory_space<any>>) target(%arg5 : memref<96x196xf32, #tpu.memory_space<vmem>>) target_semaphore(%1 : memref<!tpu.dma_semaphore, #tpu.memory_space<semaphore_mem>>)
    %c0 = arith.constant 0 : index
    %c0_0 = arith.constant 0 : index
    %2 = vector.load %arg0[%c0, %c0_0] : memref<24x97xf32, #tpu.memory_space<vmem>>, vector<24x96xf32>
    %c0_1 = arith.constant 0 : index
    %c96 = arith.constant 96 : index
    %3 = vector.load %arg0[%c0_1, %c96] : memref<24x97xf32, #tpu.memory_space<vmem>>, vector<24x1xf32>
    %c0_2 = arith.constant 0 : index
    %c0_3 = arith.constant 0 : index
    %4 = vector.load %arg1[%c0_2, %c0_3] : memref<96x25xf32, #tpu.memory_space<vmem>>, vector<96x24xf32>
    %c0_4 = arith.constant 0 : index
    %c24 = arith.constant 24 : index
    %5 = vector.load %arg1[%c0_4, %c24] : memref<96x25xf32, #tpu.memory_space<vmem>>, vector<96x1xf32>
    %c0_5 = arith.constant 0 : index
    %c0_6 = arith.constant 0 : index
    %6 = vector.load %arg2[%c0_5, %c0_6] : memref<96x1xf32, #tpu.memory_space<vmem>>, vector<96x1xf32>
    %cst = arith.constant dense<0.000000e+00> : vector<24x1xf32>
    %7 = tpu.matmul %2, %6, %cst {dimension_numbers = #tpu.dot_dimension_numbers<[1], [0], [0], [1], [0, 0, 1, 1], [], []>} : vector<24x96xf32>, vector<96x1xf32>, vector<24x1xf32> -> vector<24x1xf32>
    %8 = arith.addf %7, %3 : vector<24x1xf32>
    %cst_7 = arith.constant 0.000000e+00 : f32
    %9 = vector.broadcast %cst_7 : f32 to vector<24x1xf32>
    %10 = arith.maximumf %8, %9 : vector<24x1xf32>
    %cst_8 = arith.constant dense<0.000000e+00> : vector<96x1xf32>
    %11 = tpu.matmul %4, %10, %cst_8 {dimension_numbers = #tpu.dot_dimension_numbers<[1], [0], [0], [1], [0, 0, 1, 1], [], []>} : vector<96x24xf32>, vector<24x1xf32>, vector<96x1xf32> -> vector<96x1xf32>
    %12 = arith.addf %11, %5 : vector<96x1xf32>
    %cst_9 = arith.constant 0.166666672 : f32
    %13 = vector.broadcast %cst_9 : f32 to vector<96x1xf32>
    %14 = arith.mulf %12, %13 : vector<96x1xf32>
    %cst_10 = arith.constant 5.000000e-01 : f32
    %15 = vector.broadcast %cst_10 : f32 to vector<96x1xf32>
    %16 = arith.addf %14, %15 : vector<96x1xf32>
    %cst_11 = arith.constant 0.000000e+00 : f32
    %cst_12 = arith.constant 1.000000e+00 : f32
    %17 = vector.broadcast %cst_11 : f32 to vector<96x1xf32>
    %18 = arith.maximumf %17, %16 : vector<96x1xf32>
    %19 = vector.broadcast %cst_12 : f32 to vector<96x1xf32>
    %20 = arith.minimumf %19, %18 : vector<96x1xf32>
    %c0_i32_13 = arith.constant 0 : i32
    %21 = tpu.memref_slice %arg6[%c0_i32_13] : memref<2x!tpu.dma_semaphore, #tpu.memory_space<semaphore_mem>> -> memref<1x!tpu.dma_semaphore, #tpu.memory_space<semaphore_mem>>
    %22 = tpu.memref_squeeze %21 : memref<1x!tpu.dma_semaphore, #tpu.memory_space<semaphore_mem>> -> memref<!tpu.dma_semaphore, #tpu.memory_space<semaphore_mem>>
    tpu.wait_dma2 semaphore(%22 : memref<!tpu.dma_semaphore, #tpu.memory_space<semaphore_mem>>) src(%arg3 : memref<96x196xf32, #tpu.memory_space<any>>) dst(%arg5 : memref<96x196xf32, #tpu.memory_space<vmem>>)
    %c0_14 = arith.constant 0 : index
    %c0_15 = arith.constant 0 : index
    %23 = vector.load %arg5[%c0_14, %c0_15] : memref<96x196xf32, #tpu.memory_space<vmem>>, vector<96x196xf32>
    %24 = vector.broadcast %20 : vector<96x1xf32> to vector<96x196xf32>
    %25 = arith.mulf %23, %24 : vector<96x196xf32>
    %c0_16 = arith.constant 0 : index
    %c0_17 = arith.constant 0 : index
    %26 = vector.load %arg5[%c0_16, %c0_17] : memref<96x196xf32, #tpu.memory_space<vmem>>, vector<96x196xf32>
    tpu.vector_store %arg5[%c0_16, %c0_17], %25 {strides = array<i32>} : memref<96x196xf32, #tpu.memory_space<vmem>>, vector<96x196xf32>,
    %c1_i32 = arith.constant 1 : i32
    %27 = tpu.memref_slice %arg6[%c1_i32] : memref<2x!tpu.dma_semaphore, #tpu.memory_space<semaphore_mem>> -> memref<1x!tpu.dma_semaphore, #tpu.memory_space<semaphore_mem>>
    %28 = tpu.memref_squeeze %27 : memref<1x!tpu.dma_semaphore, #tpu.memory_space<semaphore_mem>> -> memref<!tpu.dma_semaphore, #tpu.memory_space<semaphore_mem>>
    tpu.enqueue_dma source(%arg5 : memref<96x196xf32, #tpu.memory_space<vmem>>) target(%arg4 : memref<96x196xf32, #tpu.memory_space<any>>) target_semaphore(%28 : memref<!tpu.dma_semaphore, #tpu.memory_space<semaphore_mem>>)
    %c1_i32_18 = arith.constant 1 : i32
    %29 = tpu.memref_slice %arg6[%c1_i32_18] : memref<2x!tpu.dma_semaphore, #tpu.memory_space<semaphore_mem>> -> memref<1x!tpu.dma_semaphore, #tpu.memory_space<semaphore_mem>>
    %30 = tpu.memref_squeeze %29 : memref<1x!tpu.dma_semaphore, #tpu.memory_space<semaphore_mem>> -> memref<!tpu.dma_semaphore, #tpu.memory_space<semaphore_mem>>
    tpu.wait_dma2 semaphore(%30 : memref<!tpu.dma_semaphore, #tpu.memory_space<semaphore_mem>>) src(%arg5 : memref<96x196xf32, #tpu.memory_space<vmem>>) dst(%arg4 : memref<96x196xf32, #tpu.memory_space<any>>)
    return
  }
}

</mosaic_0001>

<llo_original>
// kernel: se_block.1
$region0: #{se_block.1}
  #allocation0 [shape = 'u32[]', space=smem, size = 0x4, offset = 0x4, fixed_abs, tag = 'smem constant byte address 0x4 - core index']
  #allocation1 [shape = 'u32[144,128]{1,0:T(1,128)}', space=vmem, size = 0x12000, scoped, tag = 'internal scratch']
  #allocation2 [shape = 'f32[96,196]{1,0:T(8,128)}', space=vmem, size = 0x18000, scoped, tag = 'scratch operand']
  #allocation3 [shape = 's32[2]{0}', space=sflag, size = 0x8, scoped, tag = 'scratch operand']
  #allocation4 [shape = 's32[]', space=sflag, size = 0x4, offset = 0, fixed_abs, tag = 'sflag constant byte address 0x0 - dummy sync flag']
  #allocation5 [shape = 's32[]', space=sflag, size = 0x4, offset = 0, fixed_abs, tag = 'sflag constant byte address 0x0 - dummy sync flag']
  %s0 = inlined_call_operand.vmem [shape: f32[24,97], index: 0, kind: input, shape index: {}]
  %s1 = inlined_call_operand.vmem [shape: f32[96,25], index: 1, kind: input, shape index: {}]
  %s2 = inlined_call_operand.vmem [shape: f32[96,1], index: 2, kind: input, shape index: {}]
  %s3 = inlined_call_operand.vmem [shape: f32[96,196], index: 3, kind: input, shape index: {}, may-alias: {3,4}]
  %s4 = inlined_call_operand.vmem [shape: f32[96,196], index: 4, kind: output, shape index: {}, may-alias: {3,4}]
  %s5 = sld [smem:[#allocation0]]
  $region82: #{se_block.1} parent=0
    _
  %s7 = ssub.s32 1, %s5
  %s8 = scalar_select 0, %s7, %s5
  // Predicated region
  $region2: #{se_block.1} parent=0 // pred_check
    _
  $region3: #{se_block.1} parent=0 // pred_check_branch
    %10 = sbr.rel (0) target = $region5
  $region4: #{se_block.1} parent=0 // pred_region
    _
  $region5: #{se_block.1} parent=0 // pred_fallthru
    _
  // Predicated region
  $region6: #{se_block.1} parent=0 // pred_check
    _
  $region7: #{se_block.1} parent=0 // pred_check_branch
    %12 = sbr.rel (0) target = $region9
  $region8: #{se_block.1} parent=0 // pred_region
    _
  $region9: #{se_block.1} parent=0 // pred_fallthru
    _
  // Predicated region
  $region10: #{se_block.1} parent=0 // pred_check
    _
  $region11: #{se_block.1} parent=0 // pred_check_branch
    %14 = sbr.rel (0) target = $region13
  $region12: #{se_block.1} parent=0 // pred_region
    _
  $region13: #{se_block.1} parent=0 // pred_fallthru
    _
  %p16 = scmp.lt.u32.totalorder 192, 8
  %p17 = pneg %p16
  // Predicated region
  $region14: #{se_block.1} parent=0 // pred_check
    _
  $region15: #{se_block.1} parent=0 // pred_check_branch
    %19 = sbr.rel (%p16) target = $region17
  $region16: #{se_block.1} parent=0 // pred_region
    %s34 = sand.u32 192, 7
    %p35 = scmp.eq.s32.totalorder %s34, 0
    // Predicated region
    $region29: #{se_block.1} parent=16 // pred_check
      %p36 = pneg %p35
    $region30: #{se_block.1} parent=16 // pred_check_branch
      %38 = sbr.rel (%p36) target = $region32
    $region31: #{se_block.1} parent=16 // pred_region
      loop: start=0, step=1, limit=1
      $region33: #{se_block.1} parent=31 // loop_pre_header
        _
      $region34: #{se_block.1} parent=31 // loop_header
        %s40 = sphi 0, %s44
        %p41 = scmp.ge.s32.totalorder %s40, 1
        %s45 = sphi %s3, %s3
        %s46 = sphi [#allocation2], [#allocation2]
      $region35: #{se_block.1} parent=31 // loop_header_branch
        %43 = sbr.rel (%p41) target = $region39
      $region36: #{se_block.1} parent=31 // loop_body
        %v47 = vld [vmem:[%s45] sm:$0xff]
        %48 = vst [vmem:[%s46] sm:$0xff] %v47
        %v49 = vld [vmem:[%s45 + $0x8] sm:$0xff]
        %50 = vst [vmem:[%s46 + $0x8] sm:$0xff] %v49
        %v51 = vld [vmem:[%s45 + $0x10] sm:$0xff]
        %52 = vst [vmem:[%s46 + $0x10] sm:$0xff] %v51
        %v53 = vld [vmem:[%s45 + $0x18] sm:$0xff]
        %54 = vst [vmem:[%s46 + $0x18] sm:$0xff] %v53
        %v55 = vld [vmem:[%s45 + $0x20] sm:$0xff]
        %56 = vst [vmem:[%s46 + $0x20] sm:$0xff] %v55
        %v57 = vld [vmem:[%s45 + $0x28] sm:$0xff]
        %58 = vst [vmem:[%s46 + $0x28] sm:$0xff] %v57
        %v59 = vld [vmem:[%s45 + $0x30] sm:$0xff]
        %60 = vst [vmem:[%s46 + $0x30] sm:$0xff] %v59
        %v61 = vld [vmem:[%s45 + $0x38] sm:$0xff]
        %62 = vst [vmem:[%s46 + $0x38] sm:$0xff] %v61
        %v63 = vld [vmem:[%s45 + $0x40] sm:$0xff]
        %64 = vst [vmem:[%s46 + $0x40] sm:$0xff] %v63
        %v65 = vld [vmem:[%s45 + $0x48] sm:$0xff]
        %66 = vst [vmem:[%s46 + $0x48] sm:$0xff] %v65
        %v67 = vld [vmem:[%s45 + $0x50] sm:$0xff]
        %68 = vst [vmem:[%s46 + $0x50] sm:$0xff] %v67
        %v69 = vld [vmem:[%s45 + $0x58] sm:$0xff]
        %70 = vst [vmem:[%s46 + $0x58] sm:$0xff] %v69
        %v71 = vld [vmem:[%s45 + $0x60] sm:$0xff]
        %72 = vst [vmem:[%s46 + $0x60] sm:$0xff] %v71
        %v73 = vld [vmem:[%s45 + $0x68] sm:$0xff]
        %74 = vst [vmem:[%s46 + $0x68] sm:$0xff] %v73
        %v75 = vld [vmem:[%s45 + $0x70] sm:$0xff]
        %76 = vst [vmem:[%s46 + $0x70] sm:$0xff] %v75
        %v77 = vld [vmem:[%s45 + $0x78] sm:$0xff]
        %78 = vst [vmem:[%s46 + $0x78] sm:$0xff] %v77
        %v79 = vld [vmem:[%s45 + $0x80] sm:$0xff]
        %80 = vst [vmem:[%s46 + $0x80] sm:$0xff] %v79
        %v81 = vld [vmem:[%s45 + $0x88] sm:$0xff]
        %82 = vst [vmem:[%s46 + $0x88] sm:$0xff] %v81
        %v83 = vld [vmem:[%s45 + $0x90] sm:$0xff]
        %84 = vst [vmem:[%s46 + $0x90] sm:$0xff] %v83
        %v85 = vld [vmem:[%s45 + $0x98] sm:$0xff]
        %86 = vst [vmem:[%s46 + $0x98] sm:$0xff] %v85
        %v87 = vld [vmem:[%s45 + $0xa0] sm:$0xff]
        %88 = vst [vmem:[%s46 + $0xa0] sm:$0xff] %v87
        %v89 = vld [vmem:[%s45 + $0xa8] sm:$0xff]
        %90 = vst [vmem:[%s46 + $0xa8] sm:$0xff] %v89
        %v91 = vld [vmem:[%s45 + $0xb0] sm:$0xff]
        %92 = vst [vmem:[%s46 + $0xb0] sm:$0xff] %v91
        %v93 = vld [vmem:[%s45 + $0xb8] sm:$0xff]
        %94 = vst [vmem:[%s46 + $0xb8] sm:$0xff] %v93
      $region37: #{se_block.1} parent=31 // loop_footer
        %s44 = sadd.s32 1, %s40
      $region38: #{se_block.1} parent=31 // loop_footer_branch
        %39 = sbr.rel target = $region34
      $region39: #{se_block.1} parent=31 // loop_exit
        _
    $region32: #{se_block.1} parent=16 // pred_fallthru
      _
    %p95 = pneg %p35
    // Predicated region
    $region40: #{se_block.1} parent=16 // pred_check
      _
    $region41: #{se_block.1} parent=16 // pred_check_branch
      %97 = sbr.rel (%p35) target = $region43
    $region42: #{se_block.1} parent=16 // pred_region
      %s98 = sand.u32 192, 7
    $region43: #{se_block.1} parent=16 // pred_fallthru
      _
  $region17: #{se_block.1} parent=0 // pred_fallthru
    _
  // Predicated region
  $region18: #{se_block.1} parent=0 // pred_check
    %p20 = pneg %p16
  $region19: #{se_block.1} parent=0 // pred_check_branch
    %22 = sbr.rel (%p20) target = $region21
  $region20: #{se_block.1} parent=0 // pred_region
    %s23 = sshllo.u32 0, 192
    loop: start=0, step=1, limit=1
    $region22: #{se_block.1} parent=20 // loop_pre_header
      _
    $region23: #{se_block.1} parent=20 // loop_header
      %s25 = sphi 0, %s29
      %p26 = scmp.ge.s32.totalorder %s25, 1
      %s30 = sphi %s3, %s3
      %s31 = sphi [#allocation2], [#allocation2]
    $region24: #{se_block.1} parent=20 // loop_header_branch
      %28 = sbr.rel (%p26) target = $region28
    $region25: #{se_block.1} parent=20 // loop_body
      %v32 = vld [vmem:[%s30] sm:%s23]
      %33 = vst [vmem:[%s31] sm:%s23] %v32
    $region26: #{se_block.1} parent=20 // loop_footer
      %s29 = sadd.s32 1, %s25
    $region27: #{se_block.1} parent=20 // loop_footer_branch
      %24 = sbr.rel target = $region23
    $region28: #{se_block.1} parent=20 // loop_exit
      _
  $region21: #{se_block.1} parent=0 // pred_fallthru
    _
  // Predicated region
  $region44: #{se_block.1} parent=0 // pred_check
    _
  $region45: #{se_block.1} parent=0 // pred_check_branch
    %101 = sbr.rel (0) target = $region47
  $region46: #{se_block.1} parent=0 // pred_region
    %102 = vsyncadd [#allocation3], 3072
  $region47: #{se_block.1} parent=0 // pred_fallthru
    _
  %v103 = vld [vmem:[%s0] sm:$0xff]
  %v104 = vld [vmem:[%s0 + $0x8] sm:$0xff]
  %v105 = vld [vmem:[%s0 + $0x10] sm:$0xff]
  %v106 = vld [vmem:[%s1] sm:$0xff]
  %v107 = vld [vmem:[%s1 + $0x8] sm:$0xff]
  %v108 = vld [vmem:[%s1 + $0x10] sm:$0xff]
  %v109 = vld [vmem:[%s1 + $0x18] sm:$0xff]
  %v110 = vld [vmem:[%s1 + $0x20] sm:$0xff]
  %v111 = vld [vmem:[%s1 + $0x28] sm:$0xff]
  %v112 = vld [vmem:[%s1 + $0x30] sm:$0xff]
  %v113 = vld [vmem:[%s1 + $0x38] sm:$0xff]
  %v114 = vld [vmem:[%s1 + $0x40] sm:$0xff]
  %v115 = vld [vmem:[%s1 + $0x48] sm:$0xff]
  %v116 = vld [vmem:[%s1 + $0x50] sm:$0xff]
  %v117 = vld [vmem:[%s1 + $0x58] sm:$0xff]
  %v118 = vld [vmem:[%s2] sm:$0xff]
  %v119 = vld [vmem:[%s2 + $0x8] sm:$0xff]
  %v120 = vld [vmem:[%s2 + $0x10] sm:$0xff]
  %v121 = vld [vmem:[%s2 + $0x18] sm:$0xff]
  %v122 = vld [vmem:[%s2 + $0x20] sm:$0xff]
  %v123 = vld [vmem:[%s2 + $0x28] sm:$0xff]
  %v124 = vld [vmem:[%s2 + $0x30] sm:$0xff]
  %v125 = vld [vmem:[%s2 + $0x38] sm:$0xff]
  %v126 = vld [vmem:[%s2 + $0x40] sm:$0xff]
  %v127 = vld [vmem:[%s2 + $0x48] sm:$0xff]
  %v128 = vld [vmem:[%s2 + $0x50] sm:$0xff]
  %v129 = vld [vmem:[%s2 + $0x58] sm:$0xff]
  %133 = vrot.lane.b32.xlu0 %v103, 32
  %v134 = vpop.permute.xlu0 %133
  %135 = vrot.lane.b32.xlu0 %v104, 32
  %v136 = vpop.permute.xlu0 %135
  %137 = vrot.lane.b32.xlu0 %v105, 32
  %v138 = vpop.permute.xlu0 %137
  %vm142 = vcmask 785408
  %v143 = vsel %vm142, %v103, 0
  %v145 = vsel %vm142, %v104, 0
  %v147 = vsel %vm142, %v105, 0
  %149 = vmatprep.subr.mxu0 0.0
  %150 = vmatpush1.msra.mxu0 %v118
  %151 = vmatprep.subr.mxu0 0.0
  %152 = vmatpush1.msra.mxu0 %v119
  %153 = vmatprep.subr.mxu0 0.0
  %154 = vmatpush1.msra.mxu0 %v120
  %155 = vmatprep.subr.mxu0 0.0
  %156 = vmatpush1.msra.mxu0 %v121
  %157 = vmatprep.subr.mxu0 0.0
  %158 = vmatpush1.msra.mxu0 %v122
  %159 = vmatprep.subr.mxu0 0.0
  %160 = vmatpush1.msra.mxu0 %v123
  %161 = vmatprep.subr.mxu0 0.0
  %162 = vmatpush1.msra.mxu0 %v124
  %163 = vmatprep.subr.mxu0 0.0
  %164 = vmatpush1.msra.mxu0 %v125
  %165 = vmatprep.subr.mxu0 0.0
  %166 = vmatpush1.msra.mxu0 %v126
  %167 = vmatprep.subr.mxu0 0.0
  %168 = vmatpush1.msra.mxu0 %v127
  %169 = vmatprep.subr.mxu0 0.0
  %170 = vmatpush1.msra.mxu0 %v128
  %171 = vmatprep.subr.mxu0 0.0
  %172 = vmatpush1.msra.mxu0 %v129
  %173 = vmatprep.subr.mxu0 0.0
  %174 = vmatpush1.msra.mxu0 0.0
  %175 = vmatprep.subr.mxu0 0.0
  %176 = vmatpush1.msra.mxu0 0.0
  %177 = vmatprep.subr.mxu0 0.0
  %178 = vmatpush1.msra.mxu0 0.0
  %179 = vmatprep.subr.mxu0 0.0
  %180 = vmatpush1.msra.mxu0 0.0
  %181 = vmatprep.subr.mxu0 0.0
  %182 = vmatpush1.msra.mxu0 0.0
  %183 = vmatprep.subr.mxu0 0.0
  %184 = vmatpush1.msra.mxu0 0.0
  %185 = vmatprep.subr.mxu0 0.0
  %186 = vmatpush1.msra.mxu0 0.0
  %187 = vmatprep.subr.mxu0 0.0
  %188 = vmatpush1.msra.mxu0 0.0
  %189 = vmatprep.subr.mxu0 0.0
  %190 = vmatpush1.msra.mxu0 0.0
  %191 = vmatprep.subr.mxu0 0.0
  %192 = vmatpush1.msra.mxu0 0.0
  %193 = vmatprep.subr.mxu0 0.0
  %194 = vmatpush1.msra.mxu0 0.0
  %195 = vmatprep.subr.mxu0 0.0
  %196 = vmatpush1.msra.mxu0 0.0
  %197 = vmatprep.subr.mxu0 0.0
  %198 = vmatpush1.msra.mxu0 0.0
  %199 = vmatprep.subr.mxu0 0.0
  %200 = vmatpush1.msra.mxu0 0.0
  %201 = vmatprep.subr.mxu0 0.0
  %202 = vmatpush1.msra.mxu0 0.0
  %203 = vmatprep.subr.mxu0 0.0
  %204 = vmatpush1.msra.mxu0 0.0
  %205 = vmatprep.subr.mxu0 0.0
  %206 = vmatpush1.msra.mxu0 0.0
  %207 = vmatprep.subr.mxu0 0.0
  %208 = vmatpush1.msra.mxu0 0.0
  %209 = vmatprep.subr.mxu0 0.0
  %210 = vmatpush1.msra.mxu0 0.0
  %211 = vmatprep.subr.mxu0 0.0
  %212 = vmatpush1.msra.mxu0 0.0
  %213 = vmatprep.mubr.f32.mxu0 0.0
  %214 = vmatmul.mubr.f32.gmra.mrb[0].mxu0 %v143
  %v215 = vpop.f32.mrb[0].mxu0
  %v216 = vadd.f32 %v134, %v215
  %v217 = vpop.f32.mrb[0].mxu0
  %218 = vmatprep.mubr.f32.mxu0 0.0
  %219 = vmatmul.mubr.f32.gmra.mrb[0].mxu0 %v145
  %v220 = vpop.f32.mrb[0].mxu0
  %v221 = vadd.f32 %v136, %v220
  %v222 = vpop.f32.mrb[0].mxu0
  %223 = vmatprep.mubr.f32.mxu0 0.0
  %224 = vmatmul.mubr.f32.gmra.mrb[0].mxu0 %v147
  %v225 = vpop.f32.mrb[0].mxu0
  %v226 = vadd.f32 %v138, %v225
  %v227 = vpop.f32.mrb[0].mxu0
  %228 = vdwg.mxu0
  %v229 = vmax.f32 %v216, 0.0
  %v230 = vmax.f32 %v221, 0.0
  %v231 = vmax.f32 %v226, 0.0
  %244 = vrot.lane.b32.xlu0 %v106, 104
  %v245 = vpop.permute.xlu0 %244
  %246 = vrot.lane.b32.xlu0 %v107, 104
  %v247 = vpop.permute.xlu0 %246
  %248 = vrot.lane.b32.xlu0 %v108, 104
  %v249 = vpop.permute.xlu0 %248
  %250 = vrot.lane.b32.xlu0 %v109, 104
  %v251 = vpop.permute.xlu0 %250
  %252 = vrot.lane.b32.xlu0 %v110, 104
  %v253 = vpop.permute.xlu0 %252
  %254 = vrot.lane.b32.xlu0 %v111, 104
  %v255 = vpop.permute.xlu0 %254
  %256 = vrot.lane.b32.xlu0 %v112, 104
  %v257 = vpop.permute.xlu0 %256
  %258 = vrot.lane.b32.xlu0 %v113, 104
  %v259 = vpop.permute.xlu0 %258
  %260 = vrot.lane.b32.xlu0 %v114, 104
  %v261 = vpop.permute.xlu0 %260
  %262 = vrot.lane.b32.xlu0 %v115, 104
  %v263 = vpop.permute.xlu0 %262
  %264 = vrot.lane.b32.xlu0 %v116, 104
  %v265 = vpop.permute.xlu0 %264
  %266 = vrot.lane.b32.xlu0 %v117, 104
  %v267 = vpop.permute.xlu0 %266
  %vm280 = vcmask 195584
  %v281 = vsel %vm280, %v106, 0
  %v283 = vsel %vm280, %v107, 0
  %v285 = vsel %vm280, %v108, 0
  %v287 = vsel %vm280, %v109, 0
  %v289 = vsel %vm280, %v110, 0
  %v291 = vsel %vm280, %v111, 0
  %v293 = vsel %vm280, %v112, 0
  %v295 = vsel %vm280, %v113, 0
  %v297 = vsel %vm280, %v114, 0
  %v299 = vsel %vm280, %v115, 0
  %v301 = vsel %vm280, %v116, 0
  %v303 = vsel %vm280, %v117, 0
  %305 = vmatprep.subr.mxu0 0.0
  %306 = vmatpush1.msra.mxu0 %v229
  %307 = vmatprep.subr.mxu0 0.0
  %308 = vmatpush1.msra.mxu0 %v230
  %309 = vmatprep.subr.mxu0 0.0
  %310 = vmatpush1.msra.mxu0 %v231
  %311 = vmatprep.subr.mxu0 0.0
  %312 = vmatpush1.msra.mxu0 0.0
  %313 = vmatprep.subr.mxu0 0.0
  %314 = vmatpush1.msra.mxu0 0.0
  %315 = vmatprep.subr.mxu0 0.0
  %316 = vmatpush1.msra.mxu0 0.0
  %317 = vmatprep.subr.mxu0 0.0
  %318 = vmatpush1.msra.mxu0 0.0
  %319 = vmatprep.subr.mxu0 0.0
  %320 = vmatpush1.msra.mxu0 0.0
  %321 = vmatprep.subr.mxu0 0.0
  %322 = vmatpush1.msra.mxu0 0.0
  %323 = vmatprep.subr.mxu0 0.0
  %324 = vmatpush1.msra.mxu0 0.0
  %325 = vmatprep.subr.mxu0 0.0
  %326 = vmatpush1.msra.mxu0 0.0
  %327 = vmatprep.subr.mxu0 0.0
  %328 = vmatpush1.msra.mxu0 0.0
  %329 = vmatprep.subr.mxu0 0.0
  %330 = vmatpush1.msra.mxu0 0.0
  %331 = vmatprep.subr.mxu0 0.0
  %332 = vmatpush1.msra.mxu0 0.0
  %333 = vmatprep.subr.mxu0 0.0
  %334 = vmatpush1.msra.mxu0 0.0
  %335 = vmatprep.subr.mxu0 0.0
  %336 = vmatpush1.msra.mxu0 0.0
  %337 = vmatprep.subr.mxu0 0.0
  %338 = vmatpush1.msra.mxu0 0.0
  %339 = vmatprep.subr.mxu0 0.0
  %340 = vmatpush1.msra.mxu0 0.0
  %341 = vmatprep.subr.mxu0 0.0
  %342 = vmatpush1.msra.mxu0 0.0
  %343 = vmatprep.subr.mxu0 0.0
  %344 = vmatpush1.msra.mxu0 0.0
  %345 = vmatprep.subr.mxu0 0.0
  %346 = vmatpush1.msra.mxu0 0.0
  %347 = vmatprep.subr.mxu0 0.0
  %348 = vmatpush1.msra.mxu0 0.0
  %349 = vmatprep.subr.mxu0 0.0
  %350 = vmatpush1.msra.mxu0 0.0
  %351 = vmatprep.subr.mxu0 0.0
  %352 = vmatpush1.msra.mxu0 0.0
  %353 = vmatprep.subr.mxu0 0.0
  %354 = vmatpush1.msra.mxu0 0.0
  %355 = vmatprep.subr.mxu0 0.0
  %356 = vmatpush1.msra.mxu0 0.0
  %357 = vmatprep.subr.mxu0 0.0
  %358 = vmatpush1.msra.mxu0 0.0
  %359 = vmatprep.subr.mxu0 0.0
  %360 = vmatpush1.msra.mxu0 0.0
  %361 = vmatprep.subr.mxu0 0.0
  %362 = vmatpush1.msra.mxu0 0.0
  %363 = vmatprep.subr.mxu0 0.0
  %364 = vmatpush1.msra.mxu0 0.0
  %365 = vmatprep.subr.mxu0 0.0
  %366 = vmatpush1.msra.mxu0 0.0
  %367 = vmatprep.subr.mxu0 0.0
  %368 = vmatpush1.msra.mxu0 0.0
  %369 = vmatprep.mubr.f32.mxu0 0.0
  %370 = vmatmul.mubr.f32.gmra.mrb[0].mxu0 %v281
  %v371 = vpop.f32.mrb[0].mxu0
  %v372 = vadd.f32 %v245, %v371
  %v373 = vpop.f32.mrb[0].mxu0
  %374 = vmatprep.mubr.f32.mxu0 0.0
  %375 = vmatmul.mubr.f32.gmra.mrb[0].mxu0 %v283
  %v376 = vpop.f32.mrb[0].mxu0
  %v377 = vadd.f32 %v247, %v376
  %v378 = vpop.f32.mrb[0].mxu0
  %379 = vmatprep.mubr.f32.mxu0 0.0
  %380 = vmatmul.mubr.f32.gmra.mrb[0].mxu0 %v285
  %v381 = vpop.f32.mrb[0].mxu0
  %v382 = vadd.f32 %v249, %v381
  %v383 = vpop.f32.mrb[0].mxu0
  %384 = vmatprep.mubr.f32.mxu0 0.0
  %385 = vmatmul.mubr.f32.gmra.mrb[0].mxu0 %v287
  %v386 = vpop.f32.mrb[0].mxu0
  %v387 = vadd.f32 %v251, %v386
  %v388 = vpop.f32.mrb[0].mxu0
  %389 = vmatprep.mubr.f32.mxu0 0.0
  %390 = vmatmul.mubr.f32.gmra.mrb[0].mxu0 %v289
  %v391 = vpop.f32.mrb[0].mxu0
  %v392 = vadd.f32 %v253, %v391
  %v393 = vpop.f32.mrb[0].mxu0
  %394 = vmatprep.mubr.f32.mxu0 0.0
  %395 = vmatmul.mubr.f32.gmra.mrb[0].mxu0 %v291
  %v396 = vpop.f32.mrb[0].mxu0
  %v397 = vadd.f32 %v255, %v396
  %v398 = vpop.f32.mrb[0].mxu0
  %399 = vmatprep.mubr.f32.mxu0 0.0
  %400 = vmatmul.mubr.f32.gmra.mrb[0].mxu0 %v293
  %v401 = vpop.f32.mrb[0].mxu0
  %v402 = vadd.f32 %v257, %v401
  %v403 = vpop.f32.mrb[0].mxu0
  %404 = vmatprep.mubr.f32.mxu0 0.0
  %405 = vmatmul.mubr.f32.gmra.mrb[0].mxu0 %v295
  %v406 = vpop.f32.mrb[0].mxu0
  %v407 = vadd.f32 %v259, %v406
  %v408 = vpop.f32.mrb[0].mxu0
  %409 = vmatprep.mubr.f32.mxu0 0.0
  %410 = vmatmul.mubr.f32.gmra.mrb[0].mxu0 %v297
  %v411 = vpop.f32.mrb[0].mxu0
  %v412 = vadd.f32 %v261, %v411
  %v413 = vpop.f32.mrb[0].mxu0
  %414 = vmatprep.mubr.f32.mxu0 0.0
  %415 = vmatmul.mubr.f32.gmra.mrb[0].mxu0 %v299
  %v416 = vpop.f32.mrb[0].mxu0
  %v417 = vadd.f32 %v263, %v416
  %v418 = vpop.f32.mrb[0].mxu0
  %419 = vmatprep.mubr.f32.mxu0 0.0
  %420 = vmatmul.mubr.f32.gmra.mrb[0].mxu0 %v301
  %v421 = vpop.f32.mrb[0].mxu0
  %v422 = vadd.f32 %v265, %v421
  %v423 = vpop.f32.mrb[0].mxu0
  %424 = vmatprep.mubr.f32.mxu0 0.0
  %425 = vmatmul.mubr.f32.gmra.mrb[0].mxu0 %v303
  %v426 = vpop.f32.mrb[0].mxu0
  %v427 = vadd.f32 %v267, %v426
  %v428 = vpop.f32.mrb[0].mxu0
  %429 = vdwg.mxu0
  %v430 = vmul.f32 %v372, 0.16666667
  %v431 = vmul.f32 %v377, 0.16666667
  %v432 = vmul.f32 %v382, 0.16666667
  %v433 = vmul.f32 %v387, 0.16666667
  %v434 = vmul.f32 %v392, 0.16666667
  %v435 = vmul.f32 %v397, 0.16666667
  %v436 = vmul.f32 %v402, 0.16666667
  %v437 = vmul.f32 %v407, 0.16666667
  %v438 = vmul.f32 %v412, 0.16666667
  %v439 = vmul.f32 %v417, 0.16666667
  %v440 = vmul.f32 %v422, 0.16666667
  %v441 = vmul.f32 %v427, 0.16666667
  %v442 = vadd.f32 %v430, 0.5
  %v443 = vadd.f32 %v431, 0.5
  %v444 = vadd.f32 %v432, 0.5
  %v445 = vadd.f32 %v433, 0.5
  %v446 = vadd.f32 %v434, 0.5
  %v447 = vadd.f32 %v435, 0.5
  %v448 = vadd.f32 %v436, 0.5
  %v449 = vadd.f32 %v437, 0.5
  %v450 = vadd.f32 %v438, 0.5
  %v451 = vadd.f32 %v439, 0.5
  %v452 = vadd.f32 %v440, 0.5
  %v453 = vadd.f32 %v441, 0.5
  %v454 = vmax.f32 %v442, 0.0
  %v455 = vmax.f32 %v443, 0.0
  %v456 = vmax.f32 %v444, 0.0
  %v457 = vmax.f32 %v445, 0.0
  %v458 = vmax.f32 %v446, 0.0
  %v459 = vmax.f32 %v447, 0.0
  %v460 = vmax.f32 %v448, 0.0
  %v461 = vmax.f32 %v449, 0.0
  %v462 = vmax.f32 %v450, 0.0
  %v463 = vmax.f32 %v451, 0.0
  %v464 = vmax.f32 %v452, 0.0
  %v465 = vmax.f32 %v453, 0.0
  %v466 = vmin.f32 %v454, 1.0
  %v467 = vmin.f32 %v455, 1.0
  %v468 = vmin.f32 %v456, 1.0
  %v469 = vmin.f32 %v457, 1.0
  %v470 = vmin.f32 %v458, 1.0
  %v471 = vmin.f32 %v459, 1.0
  %v472 = vmin.f32 %v460, 1.0
  %v473 = vmin.f32 %v461, 1.0
  %v474 = vmin.f32 %v462, 1.0
  %v475 = vmin.f32 %v463, 1.0
  %v476 = vmin.f32 %v464, 1.0
  %v477 = vmin.f32 %v465, 1.0
  %s478 = smul.u32 8, 12
  %s479 = smul.u32 %s478, 2
  %s480 = sshll.u32 %s479, 4
  %481 = dma.done [#allocation3], %s480
  %v482 = vld [vmem:[#allocation2] sm:$0xff]
  %v483 = vld [vmem:[#allocation2 + $0x8] sm:$0xff]
  %v484 = vld [vmem:[#allocation2 + $0x10] sm:$0xff]
  %v485 = vld [vmem:[#allocation2 + $0x18] sm:$0xff]
  %v486 = vld [vmem:[#allocation2 + $0x20] sm:$0xff]
  %v487 = vld [vmem:[#allocation2 + $0x28] sm:$0xff]
  %v488 = vld [vmem:[#allocation2 + $0x30] sm:$0xff]
  %v489 = vld [vmem:[#allocation2 + $0x38] sm:$0xff]
  %v490 = vld [vmem:[#allocation2 + $0x40] sm:$0xff]
  %v491 = vld [vmem:[#allocation2 + $0x48] sm:$0xff]
  %v492 = vld [vmem:[#allocation2 + $0x50] sm:$0xff]
  %v493 = vld [vmem:[#allocation2 + $0x58] sm:$0xff]
  %v494 = vld [vmem:[#allocation2 + $0x60] sm:$0xff]
  %v495 = vld [vmem:[#allocation2 + $0x68] sm:$0xff]
  %v496 = vld [vmem:[#allocation2 + $0x70] sm:$0xff]
  %v497 = vld [vmem:[#allocation2 + $0x78] sm:$0xff]
  %v498 = vld [vmem:[#allocation2 + $0x80] sm:$0xff]
  %v499 = vld [vmem:[#allocation2 + $0x88] sm:$0xff]
  %v500 = vld [vmem:[#allocation2 + $0x90] sm:$0xff]
  %v501 = vld [vmem:[#allocation2 + $0x98] sm:$0xff]
  %v502 = vld [vmem:[#allocation2 + $0xa0] sm:$0xff]
  %v503 = vld [vmem:[#allocation2 + $0xa8] sm:$0xff]
  %v504 = vld [vmem:[#allocation2 + $0xb0] sm:$0xff]
  %v505 = vld [vmem:[#allocation2 + $0xb8] sm:$0xff]
  %507 = vset.pattern.permute.xlu0 0
  %508 = vperm.xlu0 %507, %v466
  %v509 = vpop.permute.xlu0 %508
  %512 = vset.pattern.permute.xlu0 0
  %513 = vperm.xlu0 %512, %v467
  %v514 = vpop.permute.xlu0 %513
  %517 = vset.pattern.permute.xlu0 0
  %518 = vperm.xlu0 %517, %v468
  %v519 = vpop.permute.xlu0 %518
  %522 = vset.pattern.permute.xlu0 0
  %523 = vperm.xlu0 %522, %v469
  %v524 = vpop.permute.xlu0 %523
  %527 = vset.pattern.permute.xlu0 0
  %528 = vperm.xlu0 %527, %v470
  %v529 = vpop.permute.xlu0 %528
  %532 = vset.pattern.permute.xlu0 0
  %533 = vperm.xlu0 %532, %v471
  %v534 = vpop.permute.xlu0 %533
  %537 = vset.pattern.permute.xlu0 0
  %538 = vperm.xlu0 %537, %v472
  %v539 = vpop.permute.xlu0 %538
  %542 = vset.pattern.permute.xlu0 0
  %543 = vperm.xlu0 %542, %v473
  %v544 = vpop.permute.xlu0 %543
  %547 = vset.pattern.permute.xlu0 0
  %548 = vperm.xlu0 %547, %v474
  %v549 = vpop.permute.xlu0 %548
  %552 = vset.pattern.permute.xlu0 0
  %553 = vperm.xlu0 %552, %v475
  %v554 = vpop.permute.xlu0 %553
  %557 = vset.pattern.permute.xlu0 0
  %558 = vperm.xlu0 %557, %v476
  %v559 = vpop.permute.xlu0 %558
  %562 = vset.pattern.permute.xlu0 0
  %563 = vperm.xlu0 %562, %v477
  %v564 = vpop.permute.xlu0 %563
  %v566 = vmul.f32 %v482, %v509
  %v567 = vmul.f32 %v483, %v509
  %v568 = vmul.f32 %v484, %v514
  %v569 = vmul.f32 %v485, %v514
  %v570 = vmul.f32 %v486, %v519
  %v571 = vmul.f32 %v487, %v519
  %v572 = vmul.f32 %v488, %v524
  %v573 = vmul.f32 %v489, %v524
  %v574 = vmul.f32 %v490, %v529
  %v575 = vmul.f32 %v491, %v529
  %v576 = vmul.f32 %v492, %v534
  %v577 = vmul.f32 %v493, %v534
  %v578 = vmul.f32 %v494, %v539
  %v579 = vmul.f32 %v495, %v539
  %v580 = vmul.f32 %v496, %v544
  %v581 = vmul.f32 %v497, %v544
  %v582 = vmul.f32 %v498, %v549
  %v583 = vmul.f32 %v499, %v549
  %v584 = vmul.f32 %v500, %v554
  %v585 = vmul.f32 %v501, %v554
  %v586 = vmul.f32 %v502, %v559
  %v587 = vmul.f32 %v503, %v559
  %v588 = vmul.f32 %v504, %v564
  %v589 = vmul.f32 %v505, %v564
  %590 = vst [vmem:[#allocation2] sm:$0xff] %v566
  %vm591 = vcmask 556032
  %592 = vst.msk [vmem:[#allocation2 + $0x8] sm:$0xff] %vm591, %v567
  %593 = vst [vmem:[#allocation2 + $0x10] sm:$0xff] %v568
  %594 = vst.msk [vmem:[#allocation2 + $0x18] sm:$0xff] %vm591, %v569
  %595 = vst [vmem:[#allocation2 + $0x20] sm:$0xff] %v570
  %596 = vst.msk [vmem:[#allocation2 + $0x28] sm:$0xff] %vm591, %v571
  %597 = vst [vmem:[#allocation2 + $0x30] sm:$0xff] %v572
  %598 = vst.msk [vmem:[#allocation2 + $0x38] sm:$0xff] %vm591, %v573
  %599 = vst [vmem:[#allocation2 + $0x40] sm:$0xff] %v574
  %600 = vst.msk [vmem:[#allocation2 + $0x48] sm:$0xff] %vm591, %v575
  %601 = vst [vmem:[#allocation2 + $0x50] sm:$0xff] %v576
  %602 = vst.msk [vmem:[#allocation2 + $0x58] sm:$0xff] %vm591, %v577
  %603 = vst [vmem:[#allocation2 + $0x60] sm:$0xff] %v578
  %604 = vst.msk [vmem:[#allocation2 + $0x68] sm:$0xff] %vm591, %v579
  %605 = vst [vmem:[#allocation2 + $0x70] sm:$0xff] %v580
  %606 = vst.msk [vmem:[#allocation2 + $0x78] sm:$0xff] %vm591, %v581
  %607 = vst [vmem:[#allocation2 + $0x80] sm:$0xff] %v582
  %608 = vst.msk [vmem:[#allocation2 + $0x88] sm:$0xff] %vm591, %v583
  %609 = vst [vmem:[#allocation2 + $0x90] sm:$0xff] %v584
  %610 = vst.msk [vmem:[#allocation2 + $0x98] sm:$0xff] %vm591, %v585
  %611 = vst [vmem:[#allocation2 + $0xa0] sm:$0xff] %v586
  %612 = vst.msk [vmem:[#allocation2 + $0xa8] sm:$0xff] %vm591, %v587
  %613 = vst [vmem:[#allocation2 + $0xb0] sm:$0xff] %v588
  %614 = vst.msk [vmem:[#allocation2 + $0xb8] sm:$0xff] %vm591, %v589
  %s615 = scalar_lea.sflag [#allocation3], 1
  %p617 = scmp.lt.u32.totalorder 192, 8
  %p618 = pneg %p617
  // Predicated region
  $region48: #{se_block.1} parent=0 // pred_check
    _
  $region49: #{se_block.1} parent=0 // pred_check_branch
    %620 = sbr.rel (%p617) target = $region51
  $region50: #{se_block.1} parent=0 // pred_region
    %s635 = sand.u32 192, 7
    %p636 = scmp.eq.s32.totalorder %s635, 0
    // Predicated region
    $region63: #{se_block.1} parent=50 // pred_check
      %p637 = pneg %p636
    $region64: #{se_block.1} parent=50 // pred_check_branch
      %639 = sbr.rel (%p637) target = $region66
    $region65: #{se_block.1} parent=50 // pred_region
      loop: start=0, step=1, limit=1
      $region67: #{se_block.1} parent=65 // loop_pre_header
        _
      $region68: #{se_block.1} parent=65 // loop_header
        %s641 = sphi 0, %s645
        %p642 = scmp.ge.s32.totalorder %s641, 1
        %s646 = sphi [#allocation2], [#allocation2]
        %s647 = sphi %s4, %s4
      $region69: #{se_block.1} parent=65 // loop_header_branch
        %644 = sbr.rel (%p642) target = $region73
      $region70: #{se_block.1} parent=65 // loop_body
        %v648 = vld [vmem:[%s646] sm:$0xff]
        %649 = vst [vmem:[%s647] sm:$0xff] %v648
        %v650 = vld [vmem:[%s646 + $0x8] sm:$0xff]
        %651 = vst [vmem:[%s647 + $0x8] sm:$0xff] %v650
        %v652 = vld [vmem:[%s646 + $0x10] sm:$0xff]
        %653 = vst [vmem:[%s647 + $0x10] sm:$0xff] %v652
        %v654 = vld [vmem:[%s646 + $0x18] sm:$0xff]
        %655 = vst [vmem:[%s647 + $0x18] sm:$0xff] %v654
        %v656 = vld [vmem:[%s646 + $0x20] sm:$0xff]
        %657 = vst [vmem:[%s647 + $0x20] sm:$0xff] %v656
        %v658 = vld [vmem:[%s646 + $0x28] sm:$0xff]
        %659 = vst [vmem:[%s647 + $0x28] sm:$0xff] %v658
        %v660 = vld [vmem:[%s646 + $0x30] sm:$0xff]
        %661 = vst [vmem:[%s647 + $0x30] sm:$0xff] %v660
        %v662 = vld [vmem:[%s646 + $0x38] sm:$0xff]
        %663 = vst [vmem:[%s647 + $0x38] sm:$0xff] %v662
        %v664 = vld [vmem:[%s646 + $0x40] sm:$0xff]
        %665 = vst [vmem:[%s647 + $0x40] sm:$0xff] %v664
        %v666 = vld [vmem:[%s646 + $0x48] sm:$0xff]
        %667 = vst [vmem:[%s647 + $0x48] sm:$0xff] %v666
        %v668 = vld [vmem:[%s646 + $0x50] sm:$0xff]
        %669 = vst [vmem:[%s647 + $0x50] sm:$0xff] %v668
        %v670 = vld [vmem:[%s646 + $0x58] sm:$0xff]
        %671 = vst [vmem:[%s647 + $0x58] sm:$0xff] %v670
        %v672 = vld [vmem:[%s646 + $0x60] sm:$0xff]
        %673 = vst [vmem:[%s647 + $0x60] sm:$0xff] %v672
        %v674 = vld [vmem:[%s646 + $0x68] sm:$0xff]
        %675 = vst [vmem:[%s647 + $0x68] sm:$0xff] %v674
        %v676 = vld [vmem:[%s646 + $0x70] sm:$0xff]
        %677 = vst [vmem:[%s647 + $0x70] sm:$0xff] %v676
        %v678 = vld [vmem:[%s646 + $0x78] sm:$0xff]
        %679 = vst [vmem:[%s647 + $0x78] sm:$0xff] %v678
        %v680 = vld [vmem:[%s646 + $0x80] sm:$0xff]
        %681 = vst [vmem:[%s647 + $0x80] sm:$0xff] %v680
        %v682 = vld [vmem:[%s646 + $0x88] sm:$0xff]
        %683 = vst [vmem:[%s647 + $0x88] sm:$0xff] %v682
        %v684 = vld [vmem:[%s646 + $0x90] sm:$0xff]
        %685 = vst [vmem:[%s647 + $0x90] sm:$0xff] %v684
        %v686 = vld [vmem:[%s646 + $0x98] sm:$0xff]
        %687 = vst [vmem:[%s647 + $0x98] sm:$0xff] %v686
        %v688 = vld [vmem:[%s646 + $0xa0] sm:$0xff]
        %689 = vst [vmem:[%s647 + $0xa0] sm:$0xff] %v688
        %v690 = vld [vmem:[%s646 + $0xa8] sm:$0xff]
        %691 = vst [vmem:[%s647 + $0xa8] sm:$0xff] %v690
        %v692 = vld [vmem:[%s646 + $0xb0] sm:$0xff]
        %693 = vst [vmem:[%s647 + $0xb0] sm:$0xff] %v692
        %v694 = vld [vmem:[%s646 + $0xb8] sm:$0xff]
        %695 = vst [vmem:[%s647 + $0xb8] sm:$0xff] %v694
      $region71: #{se_block.1} parent=65 // loop_footer
        %s645 = sadd.s32 1, %s641
      $region72: #{se_block.1} parent=65 // loop_footer_branch
        %640 = sbr.rel target = $region68
      $region73: #{se_block.1} parent=65 // loop_exit
        _
    $region66: #{se_block.1} parent=50 // pred_fallthru
      _
    %p696 = pneg %p636
    // Predicated region
    $region74: #{se_block.1} parent=50 // pred_check
      _
    $region75: #{se_block.1} parent=50 // pred_check_branch
      %698 = sbr.rel (%p636) target = $region77
    $region76: #{se_block.1} parent=50 // pred_region
      %s699 = sand.u32 192, 7
    $region77: #{se_block.1} parent=50 // pred_fallthru
      _
  $region51: #{se_block.1} parent=0 // pred_fallthru
    _
  // Predicated region
  $region52: #{se_block.1} parent=0 // pred_check
    %p621 = pneg %p617
  $region53: #{se_block.1} parent=0 // pred_check_branch
    %623 = sbr.rel (%p621) target = $region55
  $region54: #{se_block.1} parent=0 // pred_region
    %s624 = sshllo.u32 0, 192
    loop: start=0, step=1, limit=1
    $region56: #{se_block.1} parent=54 // loop_pre_header
      _
    $region57: #{se_block.1} parent=54 // loop_header
      %s626 = sphi 0, %s630
      %p627 = scmp.ge.s32.totalorder %s626, 1
      %s631 = sphi [#allocation2], [#allocation2]
      %s632 = sphi %s4, %s4
    $region58: #{se_block.1} parent=54 // loop_header_branch
      %629 = sbr.rel (%p627) target = $region62
    $region59: #{se_block.1} parent=54 // loop_body
      %v633 = vld [vmem:[%s631] sm:%s624]
      %634 = vst [vmem:[%s632] sm:%s624] %v633
    $region60: #{se_block.1} parent=54 // loop_footer
      %s630 = sadd.s32 1, %s626
    $region61: #{se_block.1} parent=54 // loop_footer_branch
      %625 = sbr.rel target = $region57
    $region62: #{se_block.1} parent=54 // loop_exit
      _
  $region55: #{se_block.1} parent=0 // pred_fallthru
    _
  // Predicated region
  $region78: #{se_block.1} parent=0 // pred_check
    _
  $region79: #{se_block.1} parent=0 // pred_check_branch
    %702 = sbr.rel (0) target = $region81
  $region80: #{se_block.1} parent=0 // pred_region
    %703 = vsyncadd %s615, 3072
  $region81: #{se_block.1} parent=0 // pred_fallthru
    _
  %s704 = sshll.u32 %s479, 4
  %705 = dma.done %s615, %s704
  %706 = vsyncmov [#allocation3]
  %s707 = vpop.sfrf %706
  %p708 = scmp.eq.s32.totalorder %s707, 0
  %p709 = pneg %p708
  %711 = shalt.err (%p709)
  %s712 = scalar_lea.sflag [#allocation3], 1
  %713 = vsyncmov %s712
  %s714 = vpop.sfrf %713
  %p715 = scmp.eq.s32.totalorder %s714, 0
  %p716 = pneg %p715
  %718 = shalt.err (%p716)

</llo_original>
